<compile_context>
chip_gen: v5e
topology: v5e:2x2
jax: 0.10.0
libtpu: 0.0.40
codegen_flags: <defaults>
</compile_context>

<pallas_src>
import functools

import jax
import jax.numpy as jnp
from jax.experimental import pallas as pl
from jax.experimental.pallas import tpu as pltpu


def _attention_head_kernel(x_ref, wqkv_ref, out_ref, *, head_size: int):
    x = x_ref[...]                      # (BB, T, E), bf16 (or f32)
    w = wqkv_ref[...]                   # (E, 3H),   bf16 (or f32)
    BB, T, E = x.shape
    H = head_size

    # Fused QKV projection: one (BB*T, E) x (E, 3H) MXU pass, f32 accumulation.
    qkv = jax.lax.dot_general(
        x.reshape(BB * T, E), w,
        dimension_numbers=(((1,), (0,)), ((), ())),
        preferred_element_type=jnp.float32,
    ).reshape(BB, T, 3 * H)

    # Fold the attention scale into Q (cheaper than scaling the (T, T) scores).
    scale = H ** (-0.5)
    q = (qkv[:, :, 0 * H:1 * H] * scale).astype(x.dtype)
    k = qkv[:, :, 1 * H:2 * H].astype(x.dtype)
    v = qkv[:, :, 2 * H:3 * H].astype(x.dtype)

    # Scores: batch over dim 0, contract the head dims directly (no K^T copy).
    wei = jax.lax.dot_general(
        q, k,
        dimension_numbers=(((2,), (2,)), ((0,), (0,))),
        preferred_element_type=jnp.float32,
    )                                    # (BB, T, T), f32

    # TODO(synk): external `mask` argument (module's mask=None path only).
    # Numerically-stable softmax, all in f32 (no bf16 VPU/EUP ops -> v5e safe).
    m = jnp.max(wei, axis=-1, keepdims=True)
    p = jnp.exp(wei - m)
    denom = jnp.sum(p, axis=-1, keepdims=True)
    p = p * pl.reciprocal(denom, approx=True)   # EUP slot; error << bf16 rounding

    # Dropout(p=0.0) is the identity; the p>0 training path is not implemented.
    # out = wei @ v, batched over dim 0, f32 accumulation.
    out = jax.lax.dot_general(
        p.astype(x.dtype), v,
        dimension_numbers=(((2,), (1,)), ((0,), (0,))),
        preferred_element_type=jnp.float32,
    )                                    # (BB, T, H)

    out_ref[...] = out.astype(out_ref.dtype)


def attention_head(x, wq, wk, wv, *, batch_block=None, use_bf16=True):
    """x: (B, T, n_embd); wq/wk/wv: (n_embd, head_size) i.e. nn.Linear.weight.T."""
    B, T, E = x.shape
    H = wq.shape[1]
    assert wq.shape == (E, H) and wk.shape == (E, H) and wv.shape == (E, H)

    if batch_block is None:
        # >= 2 grid steps when B >= 2 (both v7x TensorCores get work) while
        # keeping each step's slab as large as possible.
        batch_block = max(1, B // 2)
    assert B % batch_block == 0, "batch must be divisible by batch_block"
    grid = (B // batch_block,)

    # Fuse Q/K/V weights once on the host side: (E, 3H).
    wqkv = jnp.concatenate([wq, wk, wv], axis=1)

    in_dtype = jnp.bfloat16 if use_bf16 else x.dtype
    x_in = x.astype(in_dtype)
    wqkv = wqkv.astype(in_dtype)

    kernel = functools.partial(_attention_head_kernel, head_size=H)
    return pl.pallas_call(
        kernel,
        out_shape=jax.ShapeDtypeStruct((B, T, H), jnp.float32),
        grid_spec=pltpu.PrefetchScalarGridSpec(
            num_scalar_prefetch=0,
            grid=grid,
            in_specs=[
                pl.BlockSpec((batch_block, T, E), lambda b: (b, 0, 0)),
                pl.BlockSpec((E, 3 * H), lambda b: (0, 0)),   # grid-invariant
            ],
            out_specs=pl.BlockSpec((batch_block, T, H), lambda b: (b, 0, 0)),
        ),
        compiler_params=pltpu.CompilerParams(
            dimension_semantics=("parallel",),
        ),
    )(x_in, wqkv)


def _reference(x, wq, wk, wv):
    """Pure-JAX f32 reference matching the PyTorch forward (mask=None)."""
    q = x @ wq
    k = x @ wk
    v = x @ wv
    wei = jnp.einsum("bth,bsh->bts", q, k) * (k.shape[-1] ** -0.5)
    wei = jax.nn.softmax(wei, axis=-1)
    return jnp.einsum("bts,bsh->bth", wei, v)


if __name__ == "__main__":
    # Small shapes consistent with the module defaults
    # (block_size=128 -> T=128; n_embd / head_size chosen lane-friendly).
    B, T, n_embd, head_size = 2, 128, 32, 16

    key = jax.random.PRNGKey(0)
    kx, kq, kk, kv = jax.random.split(key, 4)
    x = jax.random.normal(kx, (B, T, n_embd), dtype=jnp.float32)
    # nn.Linear stores (out, in); we keep the transposed (in, out) layout so
    # y = x @ W reproduces nn.Linear(x) with bias=False.
    wq = (0.1 * jax.random.normal(kq, (n_embd, head_size))).astype(jnp.float32)
    wk = (0.1 * jax.random.normal(kk, (n_embd, head_size))).astype(jnp.float32)
    wv = (0.1 * jax.random.normal(kv, (n_embd, head_size))).astype(jnp.float32)

    out = attention_head(x, wq, wk, wv)
    out = jax.block_until_ready(out)

    ref = _reference(x, wq, wk, wv)
    assert out.shape == (B, T, head_size)
    # bf16 MXU operands (f32 accumulation) -> looser tolerance than pure f32.
    err = float(jnp.max(jnp.abs(out - ref)))
    assert jnp.allclose(out, ref, rtol=3e-2, atol=3e-2), err

    print("KERNEL_OK")
</pallas_src>

<mosaic_0001>
module attributes {stable_mosaic.version = 11 : i64} {
  func.func @_attention_head_kernel(%arg0: i32, %arg1: memref<1x128x32xbf16, #tpu.memory_space<vmem>>, %arg2: memref<32x48xbf16, #tpu.memory_space<vmem>>, %arg3: memref<1x128x16xf32, #tpu.memory_space<vmem>>) attributes {dimension_semantics = [#tpu.dimension_semantics<parallel>], iteration_bounds = array<i64: 2>, scalar_prefetch = 0 : i64, scratch_operands = 0 : i64, tpu.core_type = #tpu.core_type<tc>, window_params = [{transform_indices = @transform_0, window_bounds = array<i64: 1, 128, 32>}, {pipeline_mode = #tpu.pipeline_mode<synchronous>, transform_indices = @transform_1, window_bounds = array<i64: 32, 48>}, {transform_indices = @transform_2, window_bounds = array<i64: 1, 128, 16>}]} {
    %c0 = arith.constant 0 : index
    %c0_0 = arith.constant 0 : index
    %c0_1 = arith.constant 0 : index
    %0 = vector.load %arg1[%c0, %c0_0, %c0_1] : memref<1x128x32xbf16, #tpu.memory_space<vmem>>, vector<1x128x32xbf16>
    %c0_2 = arith.constant 0 : index
    %c0_3 = arith.constant 0 : index
    %1 = vector.load %arg2[%c0_2, %c0_3] : memref<32x48xbf16, #tpu.memory_space<vmem>>, vector<32x48xbf16>
    %2 = vector.shape_cast %0 : vector<1x128x32xbf16> to vector<128x32xbf16>
    %cst = arith.constant dense<0.000000e+00> : vector<128x48xf32>
    %3 = tpu.matmul %2, %1, %cst {dimension_numbers = #tpu.dot_dimension_numbers<[1], [0], [0], [1], [0, 0, 1, 1], [], []>} : vector<128x32xbf16>, vector<32x48xbf16>, vector<128x48xf32> -> vector<128x48xf32>
    %4 = vector.shape_cast %3 : vector<128x48xf32> to vector<1x128x48xf32>
    %5 = vector.extract_strided_slice %4 {offsets = [0, 0, 0], sizes = [1, 128, 16], strides = [1, 1, 1]} : vector<1x128x48xf32> to vector<1x128x16xf32>
    %cst_4 = arith.constant 2.500000e-01 : f32
    %6 = vector.broadcast %cst_4 : f32 to vector<1x128x16xf32>
    %7 = arith.mulf %5, %6 : vector<1x128x16xf32>
    %8 = arith.truncf %7 : vector<1x128x16xf32> to vector<1x128x16xbf16>
    %9 = vector.extract_strided_slice %4 {offsets = [0, 0, 16], sizes = [1, 128, 16], strides = [1, 1, 1]} : vector<1x128x48xf32> to vector<1x128x16xf32>
    %10 = arith.truncf %9 : vector<1x128x16xf32> to vector<1x128x16xbf16>
    %11 = vector.extract_strided_slice %4 {offsets = [0, 0, 32], sizes = [1, 128, 16], strides = [1, 1, 1]} : vector<1x128x48xf32> to vector<1x128x16xf32>
    %12 = arith.truncf %11 : vector<1x128x16xf32> to vector<1x128x16xbf16>
    %cst_5 = arith.constant dense<0.000000e+00> : vector<1x128x128xf32>
    %13 = tpu.matmul %8, %10, %cst_5 {dimension_numbers = #tpu.dot_dimension_numbers<[2], [2], [1], [1], [0, 0, 0, 1, 1, 1], [0], [0]>} : vector<1x128x16xbf16>, vector<1x128x16xbf16>, vector<1x128x128xf32> -> vector<1x128x128xf32>
    %cst_6 = arith.constant dense<0xFF800000> : vector<1x128xf32>
    %14 = vector.multi_reduction <maximumf>, %13, %cst_6 [2] : vector<1x128x128xf32> to vector<1x128xf32>
    %15 = vector.shape_cast %14 : vector<1x128xf32> to vector<1x128x1xf32>
    %16 = vector.broadcast %15 : vector<1x128x1xf32> to vector<1x128x128xf32>
    %17 = arith.subf %13, %16 : vector<1x128x128xf32>
    %18 = math.exp %17 : vector<1x128x128xf32>
    %cst_7 = arith.constant dense<0.000000e+00> : vector<1x128xf32>
    %19 = vector.multi_reduction <add>, %18, %cst_7 [2] : vector<1x128x128xf32> to vector<1x128xf32>
    %20 = vector.shape_cast %19 : vector<1x128xf32> to vector<1x128x1xf32>
    %21 = tpu.reciprocal %20 {approx = true} : vector<1x128x1xf32> -> vector<1x128x1xf32>
    %22 = vector.broadcast %21 : vector<1x128x1xf32> to vector<1x128x128xf32>
    %23 = arith.mulf %18, %22 : vector<1x128x128xf32>
    %24 = arith.truncf %23 : vector<1x128x128xf32> to vector<1x128x128xbf16>
    %cst_8 = arith.constant dense<0.000000e+00> : vector<1x128x16xf32>
    %25 = tpu.matmul %24, %12, %cst_8 {dimension_numbers = #tpu.dot_dimension_numbers<[2], [1], [1], [2], [0, 0, 0, 1, 1, 2], [0], [0]>} : vector<1x128x128xbf16>, vector<1x128x16xbf16>, vector<1x128x16xf32> -> vector<1x128x16xf32>
    %c0_9 = arith.constant 0 : index
    %c0_10 = arith.constant 0 : index
    %c0_11 = arith.constant 0 : index
    %26 = vector.load %arg3[%c0_9, %c0_10, %c0_11] : memref<1x128x16xf32, #tpu.memory_space<vmem>>, vector<1x128x16xf32>
    tpu.vector_store %arg3[%c0_9, %c0_10, %c0_11], %25 {strides = array<i32>} : memref<1x128x16xf32, #tpu.memory_space<vmem>>, vector<1x128x16xf32>,
    return
  }
  func.func @transform_0(%arg0: i32) -> (i32, i32, i32) {
    %c0_i32 = arith.constant 0 : i32
    %c0_i32_0 = arith.constant 0 : i32
    %c0_i32_1 = arith.constant 0 : i32
    return %arg0, %c0_i32, %c0_i32_0 : i32, i32, i32
  }
  func.func @transform_1(%arg0: i32) -> (i32, i32) {
    %c0_i32 = arith.constant 0 : i32
    %c0_i32_0 = arith.constant 0 : i32
    %c0_i32_1 = arith.constant 0 : i32
    return %c0_i32, %c0_i32_0 : i32, i32
  }
  func.func @transform_2(%arg0: i32) -> (i32, i32, i32) {
    %c0_i32 = arith.constant 0 : i32
    %c0_i32_0 = arith.constant 0 : i32
    %c0_i32_1 = arith.constant 0 : i32
    return %arg0, %c0_i32, %c0_i32_0 : i32, i32, i32
  }
}

</mosaic_0001>

<llo_original>
// kernel: tpu_custom_call.1
$region0: #{tpu_custom_call.1}
  #allocation0 [shape = 'u32[]', space=smem, size = 0x4, offset = 0x4, fixed_abs, tag = 'smem constant byte address 0x4 - core index']
  #allocation1 [shape = 'u32[72,128]{1,0:T(1,128)}', space=vmem, size = 0x9000, scoped, tag = 'internal scratch']
  %s0 = inlined_call_operand.vmem [shape: bf16[2,128,32], index: 0, kind: input, shape index: {}]
  %s1 = inlined_call_operand.vmem [shape: bf16[32,48], index: 1, kind: input, shape index: {}]
  %s2 = inlined_call_operand.vmem [shape: f32[2,128,16], index: 2, kind: output, shape index: {}]
  %s3 = sld [smem:[#allocation0]]
  $region41: #{tpu_custom_call.1} parent=0
    _
  %s5 = ssub.s32 1, %s3
  %s6 = scalar_select 0, %s5, %s3
  loop: start=0, step=1, limit=4
  $region2: #{tpu_custom_call.1} parent=0 // loop_pre_header
    _
  $region3: #{tpu_custom_call.1} parent=0 // loop_header
    %s8 = sphi 0, %s12
    %p9 = scmp.ge.s32.totalorder %s8, 4
    %s18 = sphi 0, %s20
    %s21 = sphi 0, %s18
    %s22 = sphi 0, %s21
    %s38 = sphi 0, %s22
    %s42 = sphi 0, %s42
    %s44 = sphi 0, %s42
    %s45 = sphi 0, %s44
    %s59 = sphi 0, %s45
    %s65 = sphi 0, %s67
    %s68 = sphi 0, %s65
    %s69 = sphi 0, %s68
    %s85 = sphi 0, %s69
  $region4: #{tpu_custom_call.1} parent=0 // loop_header_branch
    %11 = sbr.rel (%p9) target = $region8
  $region5: #{tpu_custom_call.1} parent=0 // loop_body
    %s13 = ssub.s32 %s8, 1
    %s14 = ssub.s32 %s8, 2
    %s15 = sadd.s32 %s8, 1
    %s16 = ssub.s32 %s8, %s15
    %p17 = scmp.eq.s32.totalorder %s16, 0
    %s19 = sadd.s32 %s18, 1
    %s20 = scalar_select %p17, %s18, %s19
    %p23 = pneg %p17
    %p24 = scmp.eq.s32.totalorder %s8, 1
    %p25 = por %p23, %p24
    %p26 = scmp.ne.s32.totalorder %s18, %s21
    %p27 = scmp.eq.s32.totalorder %s8, 0
    %p28 = por %p26, %p27
    %p29 = scmp.ne.s32.totalorder %s18, %s21
    %p30 = scmp.eq.s32.totalorder %s13, 1
    %p31 = por %p29, %p30
    %p32 = scmp.ne.s32.totalorder %s21, %s22
    %p33 = scmp.eq.s32.totalorder %s13, 0
    %p34 = por %p32, %p33
    %p35 = scmp.ne.s32.totalorder %s21, %s22
    %p36 = scmp.eq.s32.totalorder %s14, 1
    %p37 = por %p35, %p36
    %p39 = scmp.ne.s32.totalorder %s22, %s38
    %p40 = scmp.eq.s32.totalorder %s14, 0
    %p41 = por %p39, %p40
    %s43 = sadd.s32 %s42, 1
    %p46 = scmp.eq.s32.totalorder %s8, 1
    %p47 = scmp.ne.s32.totalorder %s42, %s44
    %p48 = scmp.eq.s32.totalorder %s8, 0
    %p49 = por %p47, %p48
    %p50 = scmp.ne.s32.totalorder %s42, %s44
    %p51 = scmp.eq.s32.totalorder %s13, 1
    %p52 = por %p50, %p51
    %p53 = scmp.ne.s32.totalorder %s44, %s45
    %p54 = scmp.eq.s32.totalorder %s13, 0
    %p55 = por %p53, %p54
    %p56 = scmp.ne.s32.totalorder %s44, %s45
    %p57 = scmp.eq.s32.totalorder %s14, 1
    %p58 = por %p56, %p57
    %p60 = scmp.ne.s32.totalorder %s45, %s59
    %p61 = scmp.eq.s32.totalorder %s14, 0
    %p62 = por %p60, %p61
    %s63 = ssub.s32 %s8, %s15
    %p64 = scmp.eq.s32.totalorder %s63, 0
    %s66 = sadd.s32 %s65, 1
    %s67 = scalar_select %p64, %s65, %s66
    %p70 = pneg %p64
    %p71 = scmp.eq.s32.totalorder %s8, 1
    %p72 = por %p70, %p71
    %p73 = scmp.ne.s32.totalorder %s65, %s68
    %p74 = scmp.eq.s32.totalorder %s8, 0
    %p75 = por %p73, %p74
    %p76 = scmp.ne.s32.totalorder %s65, %s68
    %p77 = scmp.eq.s32.totalorder %s13, 1
    %p78 = por %p76, %p77
    %p79 = scmp.ne.s32.totalorder %s68, %s69
    %p80 = scmp.eq.s32.totalorder %s13, 0
    %p81 = por %p79, %p80
    %p82 = scmp.ne.s32.totalorder %s68, %s69
    %p83 = scmp.eq.s32.totalorder %s14, 1
    %p84 = por %p82, %p83
    %p86 = scmp.ne.s32.totalorder %s69, %s85
    %p87 = scmp.eq.s32.totalorder %s14, 0
    %p88 = por %p86, %p87
    %p89 = scmp.le.s32.totalorder 1, %s8
    %p90 = scmp.lt.s32.totalorder %s8, 3
    %p91 = pnand %p89, %p90
    %p92 = pneg %p91
    // Predicated region
    $region9: #{tpu_custom_call.1} parent=5 // pred_check
      _
    $region10: #{tpu_custom_call.1} parent=5 // pred_check_branch
      %94 = sbr.rel (%p91) target = $region12
    $region11: #{tpu_custom_call.1} parent=5 // pred_region
      %s95 = ssub.s32 %s8, 1
      // Predicated region
      $region13: #{tpu_custom_call.1} parent=11 // pred_check
        %p96 = pneg %p55
      $region14: #{tpu_custom_call.1} parent=11 // pred_check_branch
        %98 = sbr.rel (%p96) target = $region16
      $region15: #{tpu_custom_call.1} parent=11 // pred_region
        _
      $region16: #{tpu_custom_call.1} parent=11 // pred_fallthru
        _
    $region12: #{tpu_custom_call.1} parent=5 // pred_fallthru
      _
    %p99 = scmp.lt.s32.totalorder %s8, 2
    // Predicated region
    $region17: #{tpu_custom_call.1} parent=5 // pred_check
      %p100 = pneg %p99
    $region18: #{tpu_custom_call.1} parent=5 // pred_check_branch
      %102 = sbr.rel (%p100) target = $region20
    $region19: #{tpu_custom_call.1} parent=5 // pred_region
      // Predicated region
      $region21: #{tpu_custom_call.1} parent=19 // pred_check
        %p103 = pneg %p28
      $region22: #{tpu_custom_call.1} parent=19 // pred_check_branch
        %105 = sbr.rel (%p103) target = $region24
      $region23: #{tpu_custom_call.1} parent=19 // pred_region
        %p106 = scmp.lt.s32.totalorder %s8, 1
        %s107 = scalar_select %p106, %s8, 1
        %s108 = smul.addr %s107, 16
        %s109 = smul.addr %s108, 4
        %s110 = scalar_lea.vmem %s0, %s109
      $region24: #{tpu_custom_call.1} parent=19 // pred_fallthru
        _
    $region20: #{tpu_custom_call.1} parent=5 // pred_fallthru
      _
    %p111 = scmp.le.s32.totalorder 1, %s8
    %p112 = scmp.lt.s32.totalorder %s8, 3
    %p113 = pnand %p111, %p112
    %p114 = pneg %p113
    // Predicated region
    $region25: #{tpu_custom_call.1} parent=5 // pred_check
      _
    $region26: #{tpu_custom_call.1} parent=5 // pred_check_branch
      %116 = sbr.rel (%p113) target = $region28
    $region27: #{tpu_custom_call.1} parent=5 // pred_region
      %s117 = ssub.s32 %s8, 1
      %p118 = scmp.lt.s32.totalorder %s13, 1
      %s119 = scalar_select %p118, %s13, 1
      %s120 = smul.addr %s119, 16
      %s121 = smul.addr %s120, 4
      %s122 = scalar_lea.vmem %s0, %s121
      %p123 = pneg %p34
      %p124 = pneg %p31
      %p125 = pneg %p55
      %p126 = pneg %p52
      %p127 = pneg %p81
      %p128 = pneg %p78
      %p129 = scmp.lt.s32.totalorder %s13, 1
      %s130 = scalar_select %p129, %s13, 1
      %s131 = smul.addr %s130, 16
      %s132 = smul.addr %s131, 8
      %s133 = scalar_lea.vmem %s2, %s132
      %p134 = scmp.lt.s32.totalorder %s13, 1
      %s135 = scalar_select %p134, %s13, 1
      %s136 = smul.addr %s135, 16
      %s137 = smul.addr %s136, 4
      %s138 = scalar_lea.vmem %s0, %s137
      %p139 = scmp.lt.s32.totalorder %s13, 1
      %s140 = scalar_select %p139, %s13, 1
      %s141 = smul.addr %s140, 16
      %s142 = smul.addr %s141, 8
      %s143 = scalar_lea.vmem %s2, %s142
      %v145 = vld [vmem:[%s138] sm:$0xf]
      %v146 = vld [vmem:[%s138 + $0x4] sm:$0xf]
      %v147 = vld [vmem:[%s138 + $0x8] sm:$0xf]
      %v148 = vld [vmem:[%s138 + $0xc] sm:$0xf]
      %v149 = vld [vmem:[%s138 + $0x10] sm:$0xf]
      %v150 = vld [vmem:[%s138 + $0x14] sm:$0xf]
      %v151 = vld [vmem:[%s138 + $0x18] sm:$0xf]
      %v152 = vld [vmem:[%s138 + $0x1c] sm:$0xf]
      %v153 = vld [vmem:[%s138 + $0x20] sm:$0xf]
      %v154 = vld [vmem:[%s138 + $0x24] sm:$0xf]
      %v155 = vld [vmem:[%s138 + $0x28] sm:$0xf]
      %v156 = vld [vmem:[%s138 + $0x2c] sm:$0xf]
      %v157 = vld [vmem:[%s138 + $0x30] sm:$0xf]
      %v158 = vld [vmem:[%s138 + $0x34] sm:$0xf]
      %v159 = vld [vmem:[%s138 + $0x38] sm:$0xf]
      %v160 = vld [vmem:[%s138 + $0x3c] sm:$0xf]
      %v161 = vld [vmem:[%s1] sm:$0xf]
      %v162 = vld [vmem:[%s1 + $0x4] sm:$0xf]
      %v163 = vld [vmem:[%s1 + $0x8] sm:$0xf]
      %v164 = vld [vmem:[%s1 + $0xc] sm:$0xf]
      %v181 = vunpack.c.l.b16 %v145
      %v182 = vunpack.c.l.b16 %v146
      %v183 = vunpack.c.l.b16 %v147
      %v184 = vunpack.c.l.b16 %v148
      %v185 = vunpack.c.l.b16 %v149
      %v186 = vunpack.c.l.b16 %v150
      %v187 = vunpack.c.l.b16 %v151
      %v188 = vunpack.c.l.b16 %v152
      %v189 = vunpack.c.l.b16 %v153
      %v190 = vunpack.c.l.b16 %v154
      %v191 = vunpack.c.l.b16 %v155
      %v192 = vunpack.c.l.b16 %v156
      %v193 = vunpack.c.l.b16 %v157
      %v194 = vunpack.c.l.b16 %v158
      %v195 = vunpack.c.l.b16 %v159
      %v196 = vunpack.c.l.b16 %v160
      %v197 = vpack.c.b16 %v182, %v181
      %v198 = vpack.c.b16 %v184, %v183
      %v199 = vpack.c.b16 %v186, %v185
      %v200 = vpack.c.b16 %v188, %v187
      %v201 = vpack.c.b16 %v190, %v189
      %v202 = vpack.c.b16 %v192, %v191
      %v203 = vpack.c.b16 %v194, %v193
      %v204 = vpack.c.b16 %v196, %v195
      %v209 = vunpack.c.l.b16 %v161
      %v210 = vunpack.c.l.b16 %v162
      %v211 = vunpack.c.l.b16 %v163
      %v212 = vunpack.c.l.b16 %v164
      %v213 = vpack.c.b16 %v210, %v209
      %v214 = vpack.c.b16 %v212, %v211
      %vm217 = vcmask 261120
      %v219 = vsel %vm217, %v197, 0
      %v222 = vsel %vm217, %v198, 0
      %v225 = vsel %vm217, %v199, 0
      %v228 = vsel %vm217, %v200, 0
      %v231 = vsel %vm217, %v201, 0
      %v234 = vsel %vm217, %v202, 0
      %v237 = vsel %vm217, %v203, 0
      %v240 = vsel %vm217, %v204, 0
      %242 = vmatpush.bf16.msra.mxu0 0
      %243 = vmatpush.bf16.msra.mxu0 0
      %244 = vmatpush.bf16.msra.mxu0 0
      %245 = vmatpush.bf16.msra.mxu0 0
      %246 = vmatpush.bf16.msra.mxu0 0
      %247 = vmatpush.bf16.msra.mxu0 0
      %248 = vmatpush.bf16.msra.mxu0 %v214
      %249 = vmatpush.bf16.msra.mxu0 %v213
      %250 = vmatmul.bf16.gmra.mxu0 %v219
      %v251 = vpop.f32.mrf.mxu0
      %v252 = vadd.f32 0.0, %v251
      %v253 = vpop.f32.mrf.mxu0
      %v254 = vadd.f32 0.0, %v253
      %255 = vmatmul.bf16.gmra.mxu0 %v222
      %v256 = vpop.f32.mrf.mxu0
      %v257 = vadd.f32 0.0, %v256
      %v258 = vpop.f32.mrf.mxu0
      %v259 = vadd.f32 0.0, %v258
      %260 = vmatmul.bf16.gmra.mxu0 %v225
      %v261 = vpop.f32.mrf.mxu0
      %v262 = vadd.f32 0.0, %v261
      %v263 = vpop.f32.mrf.mxu0
      %v264 = vadd.f32 0.0, %v263
      %265 = vmatmul.bf16.gmra.mxu0 %v228
      %v266 = vpop.f32.mrf.mxu0
      %v267 = vadd.f32 0.0, %v266
      %v268 = vpop.f32.mrf.mxu0
      %v269 = vadd.f32 0.0, %v268
      %270 = vmatmul.bf16.gmra.mxu0 %v231
      %v271 = vpop.f32.mrf.mxu0
      %v272 = vadd.f32 0.0, %v271
      %v273 = vpop.f32.mrf.mxu0
      %v274 = vadd.f32 0.0, %v273
      %275 = vmatmul.bf16.gmra.mxu0 %v234
      %v276 = vpop.f32.mrf.mxu0
      %v277 = vadd.f32 0.0, %v276
      %v278 = vpop.f32.mrf.mxu0
      %v279 = vadd.f32 0.0, %v278
      %280 = vmatmul.bf16.gmra.mxu0 %v237
      %v281 = vpop.f32.mrf.mxu0
      %v282 = vadd.f32 0.0, %v281
      %v283 = vpop.f32.mrf.mxu0
      %v284 = vadd.f32 0.0, %v283
      %285 = vmatmul.bf16.gmra.mxu0 %v240
      %v286 = vpop.f32.mrf.mxu0
      %v287 = vadd.f32 0.0, %v286
      %v288 = vpop.f32.mrf.mxu0
      %v289 = vadd.f32 0.0, %v288
      %290 = vdwg.mxu0
      %v291 = vmul.f32 %v252, 0.25
      %v292 = vmul.f32 %v254, 0.25
      %v293 = vmul.f32 %v257, 0.25
      %v294 = vmul.f32 %v259, 0.25
      %v295 = vmul.f32 %v262, 0.25
      %v296 = vmul.f32 %v264, 0.25
      %v297 = vmul.f32 %v267, 0.25
      %v298 = vmul.f32 %v269, 0.25
      %v299 = vmul.f32 %v272, 0.25
      %v300 = vmul.f32 %v274, 0.25
      %v301 = vmul.f32 %v277, 0.25
      %v302 = vmul.f32 %v279, 0.25
      %v303 = vmul.f32 %v282, 0.25
      %v304 = vmul.f32 %v284, 0.25
      %v305 = vmul.f32 %v287, 0.25
      %v306 = vmul.f32 %v289, 0.25
      %v307 = vpack.c.bf16 %v291, %v291
      %v308 = vpack.c.bf16 %v292, %v292
      %v309 = vpack.c.bf16 %v293, %v293
      %v310 = vpack.c.bf16 %v294, %v294
      %v311 = vpack.c.bf16 %v295, %v295
      %v312 = vpack.c.bf16 %v296, %v296
      %v313 = vpack.c.bf16 %v297, %v297
      %v314 = vpack.c.bf16 %v298, %v298
      %v315 = vpack.c.bf16 %v299, %v299
      %v316 = vpack.c.bf16 %v300, %v300
      %v317 = vpack.c.bf16 %v301, %v301
      %v318 = vpack.c.bf16 %v302, %v302
      %v319 = vpack.c.bf16 %v303, %v303
      %v320 = vpack.c.bf16 %v304, %v304
      %v321 = vpack.c.bf16 %v305, %v305
      %v322 = vpack.c.bf16 %v306, %v306
      %v323 = vpack.c.bf16 %v252, %v252
      %v324 = vpack.c.bf16 %v254, %v254
      %v325 = vpack.c.bf16 %v257, %v257
      %v326 = vpack.c.bf16 %v259, %v259
      %v327 = vpack.c.bf16 %v262, %v262
      %v328 = vpack.c.bf16 %v264, %v264
      %v329 = vpack.c.bf16 %v267, %v267
      %v330 = vpack.c.bf16 %v269, %v269
      %v331 = vpack.c.bf16 %v272, %v272
      %v332 = vpack.c.bf16 %v274, %v274
      %v333 = vpack.c.bf16 %v277, %v277
      %v334 = vpack.c.bf16 %v279, %v279
      %v335 = vpack.c.bf16 %v282, %v282
      %v336 = vpack.c.bf16 %v284, %v284
      %v337 = vpack.c.bf16 %v287, %v287
      %v338 = vpack.c.bf16 %v289, %v289
      %v355 = vunpack.c.l.b16 %v307
      %v356 = vunpack.c.l.b16 %v308
      %v357 = vunpack.c.l.b16 %v309
      %v358 = vunpack.c.l.b16 %v310
      %v359 = vunpack.c.l.b16 %v311
      %v360 = vunpack.c.l.b16 %v312
      %v361 = vunpack.c.l.b16 %v313
      %v362 = vunpack.c.l.b16 %v314
      %v363 = vunpack.c.l.b16 %v315
      %v364 = vunpack.c.l.b16 %v316
      %v365 = vunpack.c.l.b16 %v317
      %v366 = vunpack.c.l.b16 %v318
      %v367 = vunpack.c.l.b16 %v319
      %v368 = vunpack.c.l.b16 %v320
      %v369 = vunpack.c.l.b16 %v321
      %v370 = vunpack.c.l.b16 %v322
      %v371 = vpack.c.b16 %v356, %v355
      %v372 = vpack.c.b16 %v358, %v357
      %v373 = vpack.c.b16 %v360, %v359
      %v374 = vpack.c.b16 %v362, %v361
      %v375 = vpack.c.b16 %v364, %v363
      %v376 = vpack.c.b16 %v366, %v365
      %v377 = vpack.c.b16 %v368, %v367
      %v378 = vpack.c.b16 %v370, %v369
      %v395 = vunpack.c.l.b16 %v323
      %v396 = vunpack.c.l.b16 %v324
      %v397 = vunpack.c.l.b16 %v325
      %v398 = vunpack.c.l.b16 %v326
      %v399 = vunpack.c.l.b16 %v327
      %v400 = vunpack.c.l.b16 %v328
      %v401 = vunpack.c.l.b16 %v329
      %v402 = vunpack.c.l.b16 %v330
      %v403 = vunpack.c.l.b16 %v331
      %v404 = vunpack.c.l.b16 %v332
      %v405 = vunpack.c.l.b16 %v333
      %v406 = vunpack.c.l.b16 %v334
      %v407 = vunpack.c.l.b16 %v335
      %v408 = vunpack.c.l.b16 %v336
      %v409 = vunpack.c.l.b16 %v337
      %v410 = vunpack.c.l.b16 %v338
      %v411 = vpack.c.b16 %v396, %v395
      %v412 = vpack.c.b16 %v398, %v397
      %v413 = vpack.c.b16 %v400, %v399
      %v414 = vpack.c.b16 %v402, %v401
      %v415 = vpack.c.b16 %v404, %v403
      %v416 = vpack.c.b16 %v406, %v405
      %v417 = vpack.c.b16 %v408, %v407
      %v418 = vpack.c.b16 %v410, %v409
      %419 = vrot.lane.b32.xlu0 %v411, 112
      %v420 = vpop.permute.xlu0 %419
      %421 = vrot.lane.b32.xlu0 %v412, 112
      %v422 = vpop.permute.xlu0 %421
      %423 = vrot.lane.b32.xlu0 %v413, 112
      %v424 = vpop.permute.xlu0 %423
      %425 = vrot.lane.b32.xlu0 %v414, 112
      %v426 = vpop.permute.xlu0 %425
      %427 = vrot.lane.b32.xlu0 %v415, 112
      %v428 = vpop.permute.xlu0 %427
      %429 = vrot.lane.b32.xlu0 %v416, 112
      %v430 = vpop.permute.xlu0 %429
      %431 = vrot.lane.b32.xlu0 %v417, 112
      %v432 = vpop.permute.xlu0 %431
      %433 = vrot.lane.b32.xlu0 %v418, 112
      %v434 = vpop.permute.xlu0 %433
      %vm435 = vcmask 130048
      %v437 = vsel %vm435, %v371, 0
      %v440 = vsel %vm435, %v372, 0
      %v443 = vsel %vm435, %v373, 0
      %v446 = vsel %vm435, %v374, 0
      %v449 = vsel %vm435, %v375, 0
      %v452 = vsel %vm435, %v376, 0
      %v455 = vsel %vm435, %v377, 0
      %v458 = vsel %vm435, %v378, 0
      %v461 = vsel %vm435, %v420, 0
      %v464 = vsel %vm435, %v422, 0
      %v467 = vsel %vm435, %v424, 0
      %v470 = vsel %vm435, %v426, 0
      %v473 = vsel %vm435, %v428, 0
      %v476 = vsel %vm435, %v430, 0
      %v479 = vsel %vm435, %v432, 0
      %v482 = vsel %vm435, %v434, 0
      %484 = vmatpush.bf16.xpose.msra.mxu0 %v482
      %485 = vmatpush.bf16.xpose.msra.mxu0 %v479
      %486 = vmatpush.bf16.xpose.msra.mxu0 %v476
      %487 = vmatpush.bf16.xpose.msra.mxu0 %v473
      %488 = vmatpush.bf16.xpose.msra.mxu0 %v470
      %489 = vmatpush.bf16.xpose.msra.mxu0 %v467
      %490 = vmatpush.bf16.xpose.msra.mxu0 %v464
      %491 = vmatpush.bf16.xpose.msra.mxu0 %v461
      %492 = vmatmul.bf16.gmra.mxu0 %v437
      %v493 = vpop.f32.mrf.mxu0
      %v494 = vadd.f32 0.0, %v493
      %v495 = vpop.f32.mrf.mxu0
      %v496 = vadd.f32 0.0, %v495
      %497 = vmatmul.bf16.gmra.mxu0 %v440
      %v498 = vpop.f32.mrf.mxu0
      %v499 = vadd.f32 0.0, %v498
      %v500 = vpop.f32.mrf.mxu0
      %v501 = vadd.f32 0.0, %v500
      %502 = vmatmul.bf16.gmra.mxu0 %v443
      %v503 = vpop.f32.mrf.mxu0
      %v504 = vadd.f32 0.0, %v503
      %v505 = vpop.f32.mrf.mxu0
      %v506 = vadd.f32 0.0, %v505
      %507 = vmatmul.bf16.gmra.mxu0 %v446
      %v508 = vpop.f32.mrf.mxu0
      %v509 = vadd.f32 0.0, %v508
      %v510 = vpop.f32.mrf.mxu0
      %v511 = vadd.f32 0.0, %v510
      %512 = vmatmul.bf16.gmra.mxu0 %v449
      %v513 = vpop.f32.mrf.mxu0
      %v514 = vadd.f32 0.0, %v513
      %v515 = vpop.f32.mrf.mxu0
      %v516 = vadd.f32 0.0, %v515
      %517 = vmatmul.bf16.gmra.mxu0 %v452
      %v518 = vpop.f32.mrf.mxu0
      %v519 = vadd.f32 0.0, %v518
      %v520 = vpop.f32.mrf.mxu0
      %v521 = vadd.f32 0.0, %v520
      %522 = vmatmul.bf16.gmra.mxu0 %v455
      %v523 = vpop.f32.mrf.mxu0
      %v524 = vadd.f32 0.0, %v523
      %v525 = vpop.f32.mrf.mxu0
      %v526 = vadd.f32 0.0, %v525
      %527 = vmatmul.bf16.gmra.mxu0 %v458
      %v528 = vpop.f32.mrf.mxu0
      %v529 = vadd.f32 0.0, %v528
      %v530 = vpop.f32.mrf.mxu0
      %v531 = vadd.f32 0.0, %v530
      %532 = vdwg.mxu0
      %533 = vmax.xlane.f32.xlu0 %v494
      %v534 = vpop.xlane.xlu0 %533
      %535 = vmax.xlane.f32.xlu0 %v496
      %v536 = vpop.xlane.xlu0 %535
      %537 = vmax.xlane.f32.xlu0 %v499
      %v538 = vpop.xlane.xlu0 %537
      %539 = vmax.xlane.f32.xlu0 %v501
      %v540 = vpop.xlane.xlu0 %539
      %541 = vmax.xlane.f32.xlu0 %v504
      %v542 = vpop.xlane.xlu0 %541
      %543 = vmax.xlane.f32.xlu0 %v506
      %v544 = vpop.xlane.xlu0 %543
      %545 = vmax.xlane.f32.xlu0 %v509
      %v546 = vpop.xlane.xlu0 %545
      %547 = vmax.xlane.f32.xlu0 %v511
      %v548 = vpop.xlane.xlu0 %547
      %549 = vmax.xlane.f32.xlu0 %v514
      %v550 = vpop.xlane.xlu0 %549
      %551 = vmax.xlane.f32.xlu0 %v516
      %v552 = vpop.xlane.xlu0 %551
      %553 = vmax.xlane.f32.xlu0 %v519
      %v554 = vpop.xlane.xlu0 %553
      %555 = vmax.xlane.f32.xlu0 %v521
      %v556 = vpop.xlane.xlu0 %555
      %557 = vmax.xlane.f32.xlu0 %v524
      %v558 = vpop.xlane.xlu0 %557
      %559 = vmax.xlane.f32.xlu0 %v526
      %v560 = vpop.xlane.xlu0 %559
      %561 = vmax.xlane.f32.xlu0 %v529
      %v562 = vpop.xlane.xlu0 %561
      %563 = vmax.xlane.f32.xlu0 %v531
      %v564 = vpop.xlane.xlu0 %563
      %v565 = vsub.f32 %v494, %v534
      %v566 = vsub.f32 %v496, %v536
      %v567 = vsub.f32 %v499, %v538
      %v568 = vsub.f32 %v501, %v540
      %v569 = vsub.f32 %v504, %v542
      %v570 = vsub.f32 %v506, %v544
      %v571 = vsub.f32 %v509, %v546
      %v572 = vsub.f32 %v511, %v548
      %v573 = vsub.f32 %v514, %v550
      %v574 = vsub.f32 %v516, %v552
      %v575 = vsub.f32 %v519, %v554
      %v576 = vsub.f32 %v521, %v556
      %v577 = vsub.f32 %v524, %v558
      %v578 = vsub.f32 %v526, %v560
      %v579 = vsub.f32 %v529, %v562
      %v580 = vsub.f32 %v531, %v564
      %v581 = vmul.f32 %v565, 1.442695
      %v582 = vpow.pop %v581
      %v583 = vmul.f32 %v566, 1.442695
      %v584 = vpow.pop %v583
      %v585 = vmul.f32 %v567, 1.442695
      %v586 = vpow.pop %v585
      %v587 = vmul.f32 %v568, 1.442695
      %v588 = vpow.pop %v587
      %v589 = vmul.f32 %v569, 1.442695
      %v590 = vpow.pop %v589
      %v591 = vmul.f32 %v570, 1.442695
      %v592 = vpow.pop %v591
      %v593 = vmul.f32 %v571, 1.442695
      %v594 = vpow.pop %v593
      %v595 = vmul.f32 %v572, 1.442695
      %v596 = vpow.pop %v595
      %v597 = vmul.f32 %v573, 1.442695
      %v598 = vpow.pop %v597
      %v599 = vmul.f32 %v574, 1.442695
      %v600 = vpow.pop %v599
      %v601 = vmul.f32 %v575, 1.442695
      %v602 = vpow.pop %v601
      %v603 = vmul.f32 %v576, 1.442695
      %v604 = vpow.pop %v603
      %v605 = vmul.f32 %v577, 1.442695
      %v606 = vpow.pop %v605
      %v607 = vmul.f32 %v578, 1.442695
      %v608 = vpow.pop %v607
      %v609 = vmul.f32 %v579, 1.442695
      %v610 = vpow.pop %v609
      %v611 = vmul.f32 %v580, 1.442695
      %v612 = vpow.pop %v611
      %613 = vadd.xlane.f32.xlu0 %v582
      %v614 = vpop.xlane.xlu0 %613
      %615 = vadd.xlane.f32.xlu0 %v584
      %v616 = vpop.xlane.xlu0 %615
      %617 = vadd.xlane.f32.xlu0 %v586
      %v618 = vpop.xlane.xlu0 %617
      %619 = vadd.xlane.f32.xlu0 %v588
      %v620 = vpop.xlane.xlu0 %619
      %621 = vadd.xlane.f32.xlu0 %v590
      %v622 = vpop.xlane.xlu0 %621
      %623 = vadd.xlane.f32.xlu0 %v592
      %v624 = vpop.xlane.xlu0 %623
      %625 = vadd.xlane.f32.xlu0 %v594
      %v626 = vpop.xlane.xlu0 %625
      %627 = vadd.xlane.f32.xlu0 %v596
      %v628 = vpop.xlane.xlu0 %627
      %629 = vadd.xlane.f32.xlu0 %v598
      %v630 = vpop.xlane.xlu0 %629
      %631 = vadd.xlane.f32.xlu0 %v600
      %v632 = vpop.xlane.xlu0 %631
      %633 = vadd.xlane.f32.xlu0 %v602
      %v634 = vpop.xlane.xlu0 %633
      %635 = vadd.xlane.f32.xlu0 %v604
      %v636 = vpop.xlane.xlu0 %635
      %637 = vadd.xlane.f32.xlu0 %v606
      %v638 = vpop.xlane.xlu0 %637
      %639 = vadd.xlane.f32.xlu0 %v608
      %v640 = vpop.xlane.xlu0 %639
      %641 = vadd.xlane.f32.xlu0 %v610
      %v642 = vpop.xlane.xlu0 %641
      %643 = vadd.xlane.f32.xlu0 %v612
      %v644 = vpop.xlane.xlu0 %643
      %v645 = vrcp.pop %v614
      %v646 = vrcp.pop %v616
      %v647 = vrcp.pop %v618
      %v648 = vrcp.pop %v620
      %v649 = vrcp.pop %v622
      %v650 = vrcp.pop %v624
      %v651 = vrcp.pop %v626
      %v652 = vrcp.pop %v628
      %v653 = vrcp.pop %v630
      %v654 = vrcp.pop %v632
      %v655 = vrcp.pop %v634
      %v656 = vrcp.pop %v636
      %v657 = vrcp.pop %v638
      %v658 = vrcp.pop %v640
      %v659 = vrcp.pop %v642
      %v660 = vrcp.pop %v644
      %v661 = vmul.f32 %v582, %v645
      %v662 = vmul.f32 %v584, %v646
      %v663 = vmul.f32 %v586, %v647
      %v664 = vmul.f32 %v588, %v648
      %v665 = vmul.f32 %v590, %v649
      %v666 = vmul.f32 %v592, %v650
      %v667 = vmul.f32 %v594, %v651
      %v668 = vmul.f32 %v596, %v652
      %v669 = vmul.f32 %v598, %v653
      %v670 = vmul.f32 %v600, %v654
      %v671 = vmul.f32 %v602, %v655
      %v672 = vmul.f32 %v604, %v656
      %v673 = vmul.f32 %v606, %v657
      %v674 = vmul.f32 %v608, %v658
      %v675 = vmul.f32 %v610, %v659
      %v676 = vmul.f32 %v612, %v660
      %v677 = vpack.c.bf16 %v661, %v661
      %v678 = vpack.c.bf16 %v662, %v662
      %v679 = vpack.c.bf16 %v663, %v663
      %v680 = vpack.c.bf16 %v664, %v664
      %v681 = vpack.c.bf16 %v665, %v665
      %v682 = vpack.c.bf16 %v666, %v666
      %v683 = vpack.c.bf16 %v667, %v667
      %v684 = vpack.c.bf16 %v668, %v668
      %v685 = vpack.c.bf16 %v669, %v669
      %v686 = vpack.c.bf16 %v670, %v670
      %v687 = vpack.c.bf16 %v671, %v671
      %v688 = vpack.c.bf16 %v672, %v672
      %v689 = vpack.c.bf16 %v673, %v673
      %v690 = vpack.c.bf16 %v674, %v674
      %v691 = vpack.c.bf16 %v675, %v675
      %v692 = vpack.c.bf16 %v676, %v676
      %v709 = vunpack.c.l.b16 %v677
      %v710 = vunpack.c.l.b16 %v678
      %v711 = vunpack.c.l.b16 %v679
      %v712 = vunpack.c.l.b16 %v680
      %v713 = vunpack.c.l.b16 %v681
      %v714 = vunpack.c.l.b16 %v682
      %v715 = vunpack.c.l.b16 %v683
      %v716 = vunpack.c.l.b16 %v684
      %v717 = vunpack.c.l.b16 %v685
      %v718 = vunpack.c.l.b16 %v686
      %v719 = vunpack.c.l.b16 %v687
      %v720 = vunpack.c.l.b16 %v688
      %v721 = vunpack.c.l.b16 %v689
      %v722 = vunpack.c.l.b16 %v690
      %v723 = vunpack.c.l.b16 %v691
      %v724 = vunpack.c.l.b16 %v692
      %v725 = vpack.c.b16 %v710, %v709
      %v726 = vpack.c.b16 %v712, %v711
      %v727 = vpack.c.b16 %v714, %v713
      %v728 = vpack.c.b16 %v716, %v715
      %v729 = vpack.c.b16 %v718, %v717
      %v730 = vpack.c.b16 %v720, %v719
      %v731 = vpack.c.b16 %v722, %v721
      %v732 = vpack.c.b16 %v724, %v723
      %741 = vrot.lane.b32.xlu0 %v411, 96
      %v742 = vpop.permute.xlu0 %741
      %743 = vrot.lane.b32.xlu0 %v412, 96
      %v744 = vpop.permute.xlu0 %743
      %745 = vrot.lane.b32.xlu0 %v413, 96
      %v746 = vpop.permute.xlu0 %745
      %747 = vrot.lane.b32.xlu0 %v414, 96
      %v748 = vpop.permute.xlu0 %747
      %749 = vrot.lane.b32.xlu0 %v415, 96
      %v750 = vpop.permute.xlu0 %749
      %751 = vrot.lane.b32.xlu0 %v416, 96
      %v752 = vpop.permute.xlu0 %751
      %753 = vrot.lane.b32.xlu0 %v417, 96
      %v754 = vpop.permute.xlu0 %753
      %755 = vrot.lane.b32.xlu0 %v418, 96
      %v756 = vpop.permute.xlu0 %755
      %765 = vmatpush.bf16.msra.mxu0 %v756
      %766 = vmatpush.bf16.msra.mxu0 %v754
      %767 = vmatpush.bf16.msra.mxu0 %v752
      %768 = vmatpush.bf16.msra.mxu0 %v750
      %769 = vmatpush.bf16.msra.mxu0 %v748
      %770 = vmatpush.bf16.msra.mxu0 %v746
      %771 = vmatpush.bf16.msra.mxu0 %v744
      %772 = vmatpush.bf16.msra.mxu0 %v742
      %773 = vmatmul.bf16.gmra.mxu0 %v725
      %v774 = vpop.f32.mrf.mxu0
      %v775 = vadd.f32 0.0, %v774
      %v776 = vpop.f32.mrf.mxu0
      %v777 = vadd.f32 0.0, %v776
      %778 = vmatmul.bf16.gmra.mxu0 %v726
      %v779 = vpop.f32.mrf.mxu0
      %v780 = vadd.f32 0.0, %v779
      %v781 = vpop.f32.mrf.mxu0
      %v782 = vadd.f32 0.0, %v781
      %783 = vmatmul.bf16.gmra.mxu0 %v727
      %v784 = vpop.f32.mrf.mxu0
      %v785 = vadd.f32 0.0, %v784
      %v786 = vpop.f32.mrf.mxu0
      %v787 = vadd.f32 0.0, %v786
      %788 = vmatmul.bf16.gmra.mxu0 %v728
      %v789 = vpop.f32.mrf.mxu0
      %v790 = vadd.f32 0.0, %v789
      %v791 = vpop.f32.mrf.mxu0
      %v792 = vadd.f32 0.0, %v791
      %793 = vmatmul.bf16.gmra.mxu0 %v729
      %v794 = vpop.f32.mrf.mxu0
      %v795 = vadd.f32 0.0, %v794
      %v796 = vpop.f32.mrf.mxu0
      %v797 = vadd.f32 0.0, %v796
      %798 = vmatmul.bf16.gmra.mxu0 %v730
      %v799 = vpop.f32.mrf.mxu0
      %v800 = vadd.f32 0.0, %v799
      %v801 = vpop.f32.mrf.mxu0
      %v802 = vadd.f32 0.0, %v801
      %803 = vmatmul.bf16.gmra.mxu0 %v731
      %v804 = vpop.f32.mrf.mxu0
      %v805 = vadd.f32 0.0, %v804
      %v806 = vpop.f32.mrf.mxu0
      %v807 = vadd.f32 0.0, %v806
      %808 = vmatmul.bf16.gmra.mxu0 %v732
      %v809 = vpop.f32.mrf.mxu0
      %v810 = vadd.f32 0.0, %v809
      %v811 = vpop.f32.mrf.mxu0
      %v812 = vadd.f32 0.0, %v811
      %813 = vdwg.mxu0
      %814 = vst.msk [vmem:[%s143] sm:$0xff] %vm435, %v775
      %815 = vst.msk [vmem:[%s143 + $0x8] sm:$0xff] %vm435, %v777
      %816 = vst.msk [vmem:[%s143 + $0x10] sm:$0xff] %vm435, %v780
      %817 = vst.msk [vmem:[%s143 + $0x18] sm:$0xff] %vm435, %v782
      %818 = vst.msk [vmem:[%s143 + $0x20] sm:$0xff] %vm435, %v785
      %819 = vst.msk [vmem:[%s143 + $0x28] sm:$0xff] %vm435, %v787
      %820 = vst.msk [vmem:[%s143 + $0x30] sm:$0xff] %vm435, %v790
      %821 = vst.msk [vmem:[%s143 + $0x38] sm:$0xff] %vm435, %v792
      %822 = vst.msk [vmem:[%s143 + $0x40] sm:$0xff] %vm435, %v795
      %823 = vst.msk [vmem:[%s143 + $0x48] sm:$0xff] %vm435, %v797
      %824 = vst.msk [vmem:[%s143 + $0x50] sm:$0xff] %vm435, %v800
      %825 = vst.msk [vmem:[%s143 + $0x58] sm:$0xff] %vm435, %v802
      %826 = vst.msk [vmem:[%s143 + $0x60] sm:$0xff] %vm435, %v805
      %827 = vst.msk [vmem:[%s143 + $0x68] sm:$0xff] %vm435, %v807
      %828 = vst.msk [vmem:[%s143 + $0x70] sm:$0xff] %vm435, %v810
      %829 = vst.msk [vmem:[%s143 + $0x78] sm:$0xff] %vm435, %v812
      %p830 = scmp.lt.s32.totalorder %s13, 1
      %s831 = scalar_select %p830, %s13, 1
      %s832 = smul.addr %s831, 16
      %s833 = smul.addr %s832, 8
      %s834 = scalar_lea.vmem %s2, %s833
      // Predicated region
      $region29: #{tpu_custom_call.1} parent=27 // pred_check
        %p835 = pneg %p78
      $region30: #{tpu_custom_call.1} parent=27 // pred_check_branch
        %837 = sbr.rel (%p835) target = $region32
      $region31: #{tpu_custom_call.1} parent=27 // pred_region
        _
      $region32: #{tpu_custom_call.1} parent=27 // pred_fallthru
        _
    $region28: #{tpu_custom_call.1} parent=5 // pred_fallthru
      _
    %p838 = scmp.le.s32.totalorder 2, %s8
    // Predicated region
    $region33: #{tpu_custom_call.1} parent=5 // pred_check
      %p839 = pneg %p838
    $region34: #{tpu_custom_call.1} parent=5 // pred_check_branch
      %841 = sbr.rel (%p839) target = $region36
    $region35: #{tpu_custom_call.1} parent=5 // pred_region
      %s842 = ssub.s32 %s8, 2
      // Predicated region
      $region37: #{tpu_custom_call.1} parent=35 // pred_check
        %p843 = pneg %p84
      $region38: #{tpu_custom_call.1} parent=35 // pred_check_branch
        %845 = sbr.rel (%p843) target = $region40
      $region39: #{tpu_custom_call.1} parent=35 // pred_region
        %p846 = scmp.lt.s32.totalorder %s14, 1
        %s847 = scalar_select %p846, %s14, 1
        %s848 = smul.addr %s847, 16
        %s849 = smul.addr %s848, 8
        %s850 = scalar_lea.vmem %s2, %s849
      $region40: #{tpu_custom_call.1} parent=35 // pred_fallthru
        _
    $region36: #{tpu_custom_call.1} parent=5 // pred_fallthru
      _
  $region6: #{tpu_custom_call.1} parent=0 // loop_footer
    %s12 = sadd.s32 1, %s8
  $region7: #{tpu_custom_call.1} parent=0 // loop_footer_branch
    %7 = sbr.rel target = $region3
  $region8: #{tpu_custom_call.1} parent=0 // loop_exit
    _

</llo_original>
